<compile_context>
chip_gen: v5e
topology: v5e:2x2
jax: 0.10.0
libtpu: 0.0.40
codegen_flags: <defaults>
</compile_context>

<pallas_src>
import functools
import math

import jax
import jax.numpy as jnp
from jax.experimental import pallas as pl
from jax.experimental.pallas import tpu as pltpu


_VMEM_BLOCK_TARGET_BYTES = 4 << 20  # ~4 MiB input block per grid step


def _round_up(a: int, b: int) -> int:
    return -(-a // b) * b


def _pick_block_rows(n: int, per_slab_bytes: int, target_bytes: int) -> int:
    """Largest divisor of n whose block footprint is <= target, preferring >=2 blocks."""
    target = max(1, target_bytes // max(1, per_slab_bytes))
    if n >= 2:
        target = min(target, max(1, n // 2))  # >=2 grid steps -> both v7x TCs busy
    target = min(target, n)
    best = 1
    d = 1
    while d * d <= n:
        if n % d == 0:
            for cand in (d, n // d):
                if cand <= target and cand > best:
                    best = cand
        d += 1
    return best


def _grad_loss_flat_kernel(x_ref, out_ref, *, H, W, number, compute_dtype):
    # x_ref: (tbc, H*W) lane-dense VMEM tile; out_ref: (8, 128) partial-sum tile.
    HW = H * W
    x = x_ref[...]
    if x.dtype != compute_dtype:
        x = x.astype(compute_dtype)

    idx = jax.lax.broadcasted_iota(jnp.int32, x.shape, 1)  # flat index within slab
    w = idx % W

    # Neighbors along the flattened axis (wrap-around handled by masks below).
    # The second difference is symmetric in the +-1 neighbors, so roll
    # direction does not matter; use positive shifts only.
    n1a = pltpu.roll(x, shift=1, axis=1)
    n1b = pltpu.roll(x, shift=HW - 1, axis=1)
    dxx = (n1a - x) - (x - n1b)             # 3 subtracts, no 2.0* multiply
    mask_x = (w >= 1) & (w <= W - 2)

    if number == 1:
        nWa = pltpu.roll(x, shift=W, axis=1)
        nWb = pltpu.roll(x, shift=(HW - W) % HW, axis=1)
        dyy = (nWa - x) - (x - nWb)
        mask_y = (idx >= W) & (idx < (H - 1) * W)
        gx = jnp.where(mask_x, jnp.abs(dxx), 0).astype(jnp.float32)
        gy = jnp.where(mask_y, jnp.abs(dyy), 0).astype(jnp.float32)
        partial = jnp.sum(gx) + jnp.sum(gy)
    else:
        # Faithful to the PyTorch module: for number==2 BOTH grad_x and grad_y
        # use the W-direction second difference -> total = 2 * sum(dxx^2).
        d = jnp.where(mask_x, dxx, 0).astype(jnp.float32)
        partial = 2.0 * jnp.sum(d * d)

    out_ref[...] = jnp.broadcast_to(partial.astype(jnp.float32), out_ref.shape)


def _grad_loss_3d_kernel(x_ref, out_ref, *, number, compute_dtype):
    # x_ref: (tbc, H, W) with W a multiple of 128; out_ref: (8, 128).
    x = x_ref[...]
    if x.dtype != compute_dtype:
        x = x.astype(compute_dtype)

    cx = x[:, :, 1:-1]
    dxx = (x[:, :, 2:] - cx) - (cx - x[:, :, :-2])
    if number == 1:
        cy = x[:, 1:-1, :]
        dyy = (x[:, 2:, :] - cy) - (cy - x[:, :-2, :])
        partial = (jnp.sum(jnp.abs(dxx).astype(jnp.float32))
                   + jnp.sum(jnp.abs(dyy).astype(jnp.float32)))
    else:
        d = dxx.astype(jnp.float32)
        partial = 2.0 * jnp.sum(d * d)

    out_ref[...] = jnp.broadcast_to(partial.astype(jnp.float32), out_ref.shape)


def gradient_loss(inp, number: int = 1):
    """inp: [..., H, W] (any float dtype, e.g. [B, C, H, W]). Returns scalar float32."""
    assert inp.ndim >= 2
    H, W = int(inp.shape[-2]), int(inp.shape[-1])
    lead = inp.shape[:-2]
    N = int(math.prod(lead)) if lead else 1
    HW = H * W

    use_flat = (W % 128 != 0)
    if use_flat:
        per_slab_bytes = _round_up(HW, 128) * 4        # padded, sized as f32
    else:
        per_slab_bytes = _round_up(H, 8) * W * 4

    tbc = _pick_block_rows(N, per_slab_bytes, _VMEM_BLOCK_TARGET_BYTES)
    num_blocks = N // tbc                              # exact: tbc divides N

    compute_dtype = jnp.bfloat16 if inp.dtype == jnp.bfloat16 else jnp.float32

    if use_flat:
        x = inp.reshape(num_blocks, tbc, HW)           # contiguous -> free reshape
        kernel = functools.partial(_grad_loss_flat_kernel, H=H, W=W,
                                   number=number, compute_dtype=compute_dtype)
        in_spec = pl.BlockSpec((None, tbc, HW), lambda i: (i, 0, 0))
    else:
        x = inp.reshape(num_blocks, tbc, H, W)
        kernel = functools.partial(_grad_loss_3d_kernel,
                                   number=number, compute_dtype=compute_dtype)
        in_spec = pl.BlockSpec((None, tbc, H, W), lambda i: (i, 0, 0, 0))

    elems = N * HW
    flops = (12 if number == 1 else 7) * elems
    bytes_accessed = elems * inp.dtype.itemsize + num_blocks * 8 * 128 * 4

    partials = pl.pallas_call(
        kernel,
        out_shape=jax.ShapeDtypeStruct((num_blocks, 8, 128), jnp.float32),
        grid_spec=pltpu.PrefetchScalarGridSpec(
            num_scalar_prefetch=0,
            grid=(num_blocks,),
            in_specs=[in_spec],
            out_specs=pl.BlockSpec((None, 8, 128), lambda i: (i, 0, 0)),
        ),
        compiler_params=pltpu.CompilerParams(
            # Disjoint output tiles per block -> safe to parallelize (2 TCs on v7x).
            dimension_semantics=("parallel",),
            vmem_limit_bytes=48 * 1024 * 1024,
        ),
        cost_estimate=pl.CostEstimate(
            flops=int(flops), transcendentals=0, bytes_accessed=int(bytes_accessed)
        ),
    )(x)

    total = jnp.sum(partials[:, 0, 0])
    if number == 1:
        return total
    return jnp.sqrt(total + 1e-10)


def gradient_loss_ref(inp, number: int = 1):
    """Pure-JAX reference mirroring the PyTorch module."""
    x = inp.astype(jnp.float32)
    if number == 1:
        gx = jnp.abs(x[..., 2:] + x[..., :-2] - 2.0 * x[..., 1:-1])
        gy = jnp.abs(x[..., 2:, :] + x[..., :-2, :] - 2.0 * x[..., 1:-1, :])
        return jnp.sum(gx) + jnp.sum(gy)
    else:
        gx = jnp.sum((x[..., 2:] + x[..., :-2] - 2.0 * x[..., 1:-1]) ** 2)
        gy = jnp.sum((x[..., 2:] + x[..., :-2] - 2.0 * x[..., 1:-1]) ** 2)
        return jnp.sqrt(gx + gy + 1e-10)


if __name__ == "__main__":
    key = jax.random.PRNGKey(0)
    B, C, H, W = 2, 4, 16, 16
    x = jax.random.normal(key, (B, C, H, W), dtype=jnp.float32)

    out1 = jax.block_until_ready(gradient_loss(x, number=1))
    ref1 = gradient_loss_ref(x, number=1)
    assert jnp.allclose(out1, ref1, rtol=1e-5, atol=1e-5), (out1, ref1)

    out2 = jax.block_until_ready(gradient_loss(x, number=2))
    ref2 = gradient_loss_ref(x, number=2)
    assert jnp.allclose(out2, ref2, rtol=1e-5, atol=1e-5), (out2, ref2)

    print("KERNEL_OK")
</pallas_src>

<mosaic_0001>
module attributes {stable_mosaic.version = 11 : i64} {
  func.func @_grad_loss_flat_kernel(%arg0: i32, %arg1: memref<1x4x256xf32, #tpu.memory_space<vmem>>, %arg2: memref<1x8x128xf32, #tpu.memory_space<vmem>>) attributes {dimension_semantics = [#tpu.dimension_semantics<parallel>], iteration_bounds = array<i64: 2>, scalar_prefetch = 0 : i64, scratch_operands = 0 : i64, tpu.core_type = #tpu.core_type<tc>, window_params = [{transform_indices = @transform_0, window_bounds = array<i64: 1, 4, 256>}, {transform_indices = @transform_1, window_bounds = array<i64: 1, 8, 128>}]} {
    %c0 = arith.constant 0 : index
    %c0_0 = arith.constant 0 : index
    %c0_1 = arith.constant 0 : index
    %0 = vector.load %arg1[%c0, %c0_0, %c0_1] : memref<1x4x256xf32, #tpu.memory_space<vmem>>, vector<1x4x256xf32>
    %1 = vector.shape_cast %0 : vector<1x4x256xf32> to vector<4x256xf32>
    %2 = tpu.iota {dimensions = array<i32: 1>} : vector<4x256xi32>
    %c16_i32 = arith.constant 16 : i32
    %c0_i32 = arith.constant 0 : i32
    %3 = arith.cmpi eq, %c16_i32, %c0_i32 : i32
    %c1_i32 = arith.constant 1 : i32
    %4 = arith.select %3, %c1_i32, %c16_i32 : i32
    %5 = vector.broadcast %4 : i32 to vector<4x256xi32>
    %6 = arith.remsi %2, %5 : vector<4x256xi32>
    %c0_i32_2 = arith.constant 0 : i32
    %7 = vector.broadcast %c0_i32_2 : i32 to vector<4x256xi32>
    %8 = arith.cmpi ne, %6, %7 : vector<4x256xi32>
    %c0_i32_3 = arith.constant 0 : i32
    %9 = vector.broadcast %c0_i32_3 : i32 to vector<4x256xi32>
    %10 = arith.cmpi slt, %6, %9 : vector<4x256xi32>
    %c0_i32_4 = arith.constant 0 : i32
    %11 = arith.cmpi slt, %4, %c0_i32_4 : i32
    %12 = vector.broadcast %11 : i1 to vector<4x256xi1>
    %13 = vector.broadcast %12 : vector<4x256xi1> to vector<4x256xi1>
    %14 = arith.xori %10, %13 : vector<4x256xi1>
    %15 = arith.andi %14, %8 : vector<4x256xi1>
    %16 = vector.broadcast %4 : i32 to vector<4x256xi32>
    %17 = arith.addi %6, %16 : vector<4x256xi32>
    %18 = arith.select %15, %17, %6 : vector<4x256xi1>, vector<4x256xi32>
    %c1_i32_5 = arith.constant 1 : i32
    %19 = tpu.dynamic_rotate %1 by %c1_i32_5 dim 1 : vector<4x256xf32>, i32 -> vector<4x256xf32>
    %c255_i32 = arith.constant 255 : i32
    %20 = tpu.dynamic_rotate %1 by %c255_i32 dim 1 : vector<4x256xf32>, i32 -> vector<4x256xf32>
    %21 = arith.subf %19, %1 : vector<4x256xf32>
    %22 = arith.subf %1, %20 : vector<4x256xf32>
    %23 = arith.subf %21, %22 : vector<4x256xf32>
    %c1_i32_6 = arith.constant 1 : i32
    %24 = vector.broadcast %c1_i32_6 : i32 to vector<4x256xi32>
    %25 = arith.cmpi sge, %18, %24 : vector<4x256xi32>
    %c14_i32 = arith.constant 14 : i32
    %26 = vector.broadcast %c14_i32 : i32 to vector<4x256xi32>
    %27 = arith.cmpi sle, %18, %26 : vector<4x256xi32>
    %28 = arith.andi %25, %27 : vector<4x256xi1>
    %c16_i32_7 = arith.constant 16 : i32
    %29 = tpu.dynamic_rotate %1 by %c16_i32_7 dim 1 : vector<4x256xf32>, i32 -> vector<4x256xf32>
    %c240_i32 = arith.constant 240 : i32
    %30 = tpu.dynamic_rotate %1 by %c240_i32 dim 1 : vector<4x256xf32>, i32 -> vector<4x256xf32>
    %31 = arith.subf %29, %1 : vector<4x256xf32>
    %32 = arith.subf %1, %30 : vector<4x256xf32>
    %33 = arith.subf %31, %32 : vector<4x256xf32>
    %c16_i32_8 = arith.constant 16 : i32
    %34 = vector.broadcast %c16_i32_8 : i32 to vector<4x256xi32>
    %35 = arith.cmpi sge, %2, %34 : vector<4x256xi32>
    %c240_i32_9 = arith.constant 240 : i32
    %36 = vector.broadcast %c240_i32_9 : i32 to vector<4x256xi32>
    %37 = arith.cmpi slt, %2, %36 : vector<4x256xi32>
    %38 = arith.andi %35, %37 : vector<4x256xi1>
    %39 = math.absf %23 : vector<4x256xf32>
    %c0_i32_10 = arith.constant 0 : i32
    %40 = arith.sitofp %c0_i32_10 : i32 to f32
    %41 = vector.broadcast %40 : f32 to vector<4x256xf32>
    %42 = arith.select %28, %39, %41 : vector<4x256xi1>, vector<4x256xf32>
    %43 = math.absf %33 : vector<4x256xf32>
    %c0_i32_11 = arith.constant 0 : i32
    %44 = arith.sitofp %c0_i32_11 : i32 to f32
    %45 = vector.broadcast %44 : f32 to vector<4x256xf32>
    %46 = arith.select %38, %43, %45 : vector<4x256xi1>, vector<4x256xf32>
    %47 = vector.shape_cast %42 : vector<4x256xf32> to vector<1x4x256xf32>
    %cst = arith.constant dense<0.000000e+00> : vector<1xf32>
    %48 = vector.multi_reduction <add>, %47, %cst [1, 2] : vector<1x4x256xf32> to vector<1xf32>
    %49 = vector.shape_cast %48 : vector<1xf32> to vector<1x1x1xf32>
    %50 = vector.extract %49[0, 0, 0] : f32 from vector<1x1x1xf32>
    %51 = vector.shape_cast %46 : vector<4x256xf32> to vector<1x4x256xf32>
    %cst_12 = arith.constant dense<0.000000e+00> : vector<1xf32>
    %52 = vector.multi_reduction <add>, %51, %cst_12 [1, 2] : vector<1x4x256xf32> to vector<1xf32>
    %53 = vector.shape_cast %52 : vector<1xf32> to vector<1x1x1xf32>
    %54 = vector.extract %53[0, 0, 0] : f32 from vector<1x1x1xf32>
    %55 = arith.addf %50, %54 : f32
    %56 = vector.broadcast %55 : f32 to vector<8x128xf32>
    %c0_13 = arith.constant 0 : index
    %c0_14 = arith.constant 0 : index
    %c0_15 = arith.constant 0 : index
    %57 = vector.load %arg2[%c0_13, %c0_14, %c0_15] : memref<1x8x128xf32, #tpu.memory_space<vmem>>, vector<1x8x128xf32>
    %58 = vector.shape_cast %57 : vector<1x8x128xf32> to vector<8x128xf32>
    %59 = vector.shape_cast %56 : vector<8x128xf32> to vector<1x8x128xf32>
    tpu.vector_store %arg2[%c0_13, %c0_14, %c0_15], %59 {strides = array<i32>} : memref<1x8x128xf32, #tpu.memory_space<vmem>>, vector<1x8x128xf32>,
    return
  }
  func.func @transform_0(%arg0: i32) -> (i32, i32, i32) {
    %c0_i32 = arith.constant 0 : i32
    %c0_i32_0 = arith.constant 0 : i32
    %c0_i32_1 = arith.constant 0 : i32
    return %arg0, %c0_i32, %c0_i32_0 : i32, i32, i32
  }
  func.func @transform_1(%arg0: i32) -> (i32, i32, i32) {
    %c0_i32 = arith.constant 0 : i32
    %c0_i32_0 = arith.constant 0 : i32
    %c0_i32_1 = arith.constant 0 : i32
    return %arg0, %c0_i32, %c0_i32_0 : i32, i32, i32
  }
}

</mosaic_0001>

<llo_original>
// kernel: tpu_custom_call.1
$region0: #{tpu_custom_call.1}
  #allocation0 [shape = 'u32[]', space=smem, size = 0x4, offset = 0x4, fixed_abs, tag = 'smem constant byte address 0x4 - core index']
  #allocation1 [shape = 'u32[72,128]{1,0:T(1,128)}', space=vmem, size = 0x9000, scoped, tag = 'internal scratch']
  %s0 = inlined_call_operand.hbm [shape: f32[2,4,256], index: 0, kind: input, shape index: {}]
  %s1 = inlined_call_operand.hbm [shape: f32[2,8,128], index: 1, kind: output, shape index: {}]
  %s2 = sld [smem:[#allocation0]]
  $region41: #{tpu_custom_call.1} parent=0
    _
  %s4 = ssub.s32 1, %s2
  %s5 = scalar_select 0, %s4, %s2
  $region1: #{tpu_custom_call.1} parent=0
    #allocation2 [shape = 'u8[8192]{0}', space=vmem, size = 0x2000, scoped, tag = 'input window, operand 0']
    #allocation3 [shape = 's32[2]{0}', space=sflag, size = 0x8, scoped, tag = 'scoped memory for tpu_custom_call.1']
    #allocation4 [shape = 's32[2]{0}', space=sflag, size = 0x8, scoped, tag = 'scoped memory for tpu_custom_call.1']
    #allocation5 [shape = 'u8[8192]{0}', space=vmem, size = 0x2000, scoped, tag = 'output window, operand 0']
    %6 = vsyncpa [#allocation3], 0
    %s7 = scalar_lea.sflag [#allocation3], 1
    %8 = vsyncpa %s7, 0
    %9 = vsyncpa [#allocation4], 0
    %s10 = scalar_lea.sflag [#allocation4], 1
    %11 = vsyncpa %s10, 0
    loop: start=0, step=1, limit=4
    $region2: #{tpu_custom_call.1} parent=1 // loop_pre_header
      _
    $region3: #{tpu_custom_call.1} parent=1 // loop_header
      %s13 = sphi 0, %s17
      %p14 = scmp.ge.s32.totalorder %s13, 4
      %s23 = sphi 0, %s25
      %s26 = sphi 0, %s23
      %s27 = sphi 0, %s26
      %s43 = sphi 0, %s27
      %s49 = sphi 0, %s51
      %s52 = sphi 0, %s49
      %s53 = sphi 0, %s52
      %s69 = sphi 0, %s53
    $region4: #{tpu_custom_call.1} parent=1 // loop_header_branch
      %16 = sbr.rel (%p14) target = $region8
    $region5: #{tpu_custom_call.1} parent=1 // loop_body
      %s18 = ssub.s32 %s13, 1
      %s19 = ssub.s32 %s13, 2
      %s20 = sadd.s32 %s13, 1
      %s21 = ssub.s32 %s13, %s20
      %p22 = scmp.eq.s32.totalorder %s21, 0
      %s24 = sadd.s32 %s23, 1
      %s25 = scalar_select %p22, %s23, %s24
      %p28 = pneg %p22
      %p29 = scmp.eq.s32.totalorder %s13, 1
      %p30 = por %p28, %p29
      %p31 = scmp.ne.s32.totalorder %s23, %s26
      %p32 = scmp.eq.s32.totalorder %s13, 0
      %p33 = por %p31, %p32
      %p34 = scmp.ne.s32.totalorder %s23, %s26
      %p35 = scmp.eq.s32.totalorder %s18, 1
      %p36 = por %p34, %p35
      %p37 = scmp.ne.s32.totalorder %s26, %s27
      %p38 = scmp.eq.s32.totalorder %s18, 0
      %p39 = por %p37, %p38
      %p40 = scmp.ne.s32.totalorder %s26, %s27
      %p41 = scmp.eq.s32.totalorder %s19, 1
      %p42 = por %p40, %p41
      %p44 = scmp.ne.s32.totalorder %s27, %s43
      %p45 = scmp.eq.s32.totalorder %s19, 0
      %p46 = por %p44, %p45
      %s47 = ssub.s32 %s13, %s20
      %p48 = scmp.eq.s32.totalorder %s47, 0
      %s50 = sadd.s32 %s49, 1
      %s51 = scalar_select %p48, %s49, %s50
      %p54 = pneg %p48
      %p55 = scmp.eq.s32.totalorder %s13, 1
      %p56 = por %p54, %p55
      %p57 = scmp.ne.s32.totalorder %s49, %s52
      %p58 = scmp.eq.s32.totalorder %s13, 0
      %p59 = por %p57, %p58
      %p60 = scmp.ne.s32.totalorder %s49, %s52
      %p61 = scmp.eq.s32.totalorder %s18, 1
      %p62 = por %p60, %p61
      %p63 = scmp.ne.s32.totalorder %s52, %s53
      %p64 = scmp.eq.s32.totalorder %s18, 0
      %p65 = por %p63, %p64
      %p66 = scmp.ne.s32.totalorder %s52, %s53
      %p67 = scmp.eq.s32.totalorder %s19, 1
      %p68 = por %p66, %p67
      %p70 = scmp.ne.s32.totalorder %s53, %s69
      %p71 = scmp.eq.s32.totalorder %s19, 0
      %p72 = por %p70, %p71
      %p73 = scmp.le.s32.totalorder 1, %s13
      %p74 = scmp.lt.s32.totalorder %s13, 3
      %p75 = pnand %p73, %p74
      %p76 = pneg %p75
      // Predicated region
      $region9: #{tpu_custom_call.1} parent=5 // pred_check
        _
      $region10: #{tpu_custom_call.1} parent=5 // pred_check_branch
        %78 = sbr.rel (%p75) target = $region12
      $region11: #{tpu_custom_call.1} parent=5 // pred_region
        %s79 = ssub.s32 %s13, 1
      $region12: #{tpu_custom_call.1} parent=5 // pred_fallthru
        _
      %p80 = scmp.lt.s32.totalorder %s13, 2
      // Predicated region
      $region13: #{tpu_custom_call.1} parent=5 // pred_check
        %p81 = pneg %p80
      $region14: #{tpu_custom_call.1} parent=5 // pred_check_branch
        %83 = sbr.rel (%p81) target = $region16
      $region15: #{tpu_custom_call.1} parent=5 // pred_region
        // Predicated region
        $region17: #{tpu_custom_call.1} parent=15 // pred_check
          %p84 = pneg %p33
        $region18: #{tpu_custom_call.1} parent=15 // pred_check_branch
          %86 = sbr.rel (%p84) target = $region20
        $region19: #{tpu_custom_call.1} parent=15 // pred_region
          %s87 = sand.u32 %s23, 1
          %s88 = scalar_lea.sflag [#allocation3], %s87
          %s89 = sand.u32 %s23, 1
          %s90 = smul.addr %s89, 8
          %s91 = scalar_lea.vmem [#allocation2], %s90
          %93 = vsyncadd %s88, 0
          %s94 = smul.addr %s13, 2
          %s95 = smul.addr %s94, 4
          %s96 = scalar_lea.hbm %s0, %s95
          %s98 = sshll.u32 %s96, 4
          %s99 = int_to_ptr.hbm [resolvable:$true] %s98
          %s100 = sshll.u32 %s91, 4
          %s101 = int_to_ptr.vmem [resolvable:$true] %s100
          %103 = dma.hbm_to_vmem [thread:$0]  %s99, 128, %s101, %s88
        $region20: #{tpu_custom_call.1} parent=15 // pred_fallthru
          _
      $region16: #{tpu_custom_call.1} parent=5 // pred_fallthru
        _
      %p104 = scmp.le.s32.totalorder 1, %s13
      %p105 = scmp.lt.s32.totalorder %s13, 3
      %p106 = pnand %p104, %p105
      %p107 = pneg %p106
      // Predicated region
      $region21: #{tpu_custom_call.1} parent=5 // pred_check
        _
      $region22: #{tpu_custom_call.1} parent=5 // pred_check_branch
        %109 = sbr.rel (%p106) target = $region24
      $region23: #{tpu_custom_call.1} parent=5 // pred_region
        %s110 = ssub.s32 %s13, 1
        %s111 = sand.u32 %s26, 1
        %s112 = scalar_lea.sflag [#allocation3], %s111
        %s113 = sand.u32 %s26, 1
        %s114 = smul.addr %s113, 8
        %s115 = scalar_lea.vmem [#allocation2], %s114
        // Predicated region
        $region25: #{tpu_custom_call.1} parent=23 // pred_check
          %p116 = pneg %p39
        $region26: #{tpu_custom_call.1} parent=23 // pred_check_branch
          %118 = sbr.rel (%p116) target = $region28
        $region27: #{tpu_custom_call.1} parent=23 // pred_region
          %120 = dma.done %s112, 128
        $region28: #{tpu_custom_call.1} parent=23 // pred_fallthru
          _
        %s121 = sand.u32 %s26, 1
        %s122 = scalar_lea.sflag [#allocation3], %s121
        %s123 = sand.u32 %s26, 1
        %s124 = smul.addr %s123, 8
        %s125 = scalar_lea.vmem [#allocation2], %s124
        %p126 = pneg %p39
        %p127 = pneg %p36
        %p128 = pneg %p65
        %p129 = pneg %p62
        %s130 = sand.u32 %s52, 1
        %s131 = scalar_lea.sflag [#allocation4], %s130
        %s132 = sand.u32 %s52, 1
        %s133 = smul.addr %s132, 8
        %s134 = scalar_lea.vmem [#allocation5], %s133
        %v135 = vld [vmem:[%s115] sm:$0xff]
        %v136 = vlaneseq
        %v137 = vand.u32 %v136, 127
        %v138 = vadd.s32 %v137, 128
        %vm139 = vcmp.lt.s32.totalorder %v137, 0
        %v140 = vsub.s32 0, %v137
        %v141 = vsel %vm139, %v140, %v137
        %v142 = vshrl.u32 %v141, 4
        %v143 = vand.u32 %v141, 15
        %v144 = vsub.s32 0, %v143
        %v145 = vsel %vm139, %v144, %v143
        %vm146 = vcmp.lt.s32.totalorder %v138, 0
        %v147 = vsub.s32 0, %v138
        %v148 = vsel %vm146, %v147, %v138
        %v149 = vshrl.u32 %v148, 4
        %v150 = vand.u32 %v148, 15
        %v151 = vsub.s32 0, %v150
        %v152 = vsel %vm146, %v151, %v150
        %vm153 = vcmp.ne.s32.totalorder %v145, 0
        %vm154 = vcmp.ne.s32.totalorder %v152, 0
        %vm155 = vcmp.lt.s32.totalorder %v145, 0
        %vm156 = vcmp.lt.s32.totalorder %v152, 0
        %vm157 = vmand %vm155, %vm153
        %vm158 = vmand %vm156, %vm154
        %v159 = vadd.s32 %v145, 16
        %v160 = vadd.s32 %v152, 16
        %v161 = vsel %vm157, %v159, %v145
        %v162 = vsel %vm158, %v160, %v152
        %164 = vst [vmem:[#allocation1] ss:$2 sm:$0xff] %v135
        %v165 = vld.sshfl [vmem:[#allocation1] sm:$0xff pattern:$0x75316420]
        %v166 = vld.sshfl [vmem:[#allocation1 + $0x8] sm:$0xff pattern:$0x75316420]
        %169 = vrot.lane.b32.xlu0 %v165, 1
        %v170 = vpop.permute.xlu0 %169
        %171 = vrot.lane.b32.xlu0 %v166, 1
        %v172 = vpop.permute.xlu0 %171
        %vm173 = vcmp.lt.s32.totalorder %v137, 1
        %v174 = vsel %vm173, %v170, %v172
        %v175 = vsel %vm173, %v172, %v170
        %176 = vst [vmem:[#allocation1] ss:$2 sm:$0xff] %v135
        %v177 = vld.sshfl [vmem:[#allocation1] sm:$0xff pattern:$0x75316420]
        %v178 = vld.sshfl [vmem:[#allocation1 + $0x8] sm:$0xff pattern:$0x75316420]
        %181 = vrot.lane.b32.xlu0 %v177, 127
        %v182 = vpop.permute.xlu0 %181
        %183 = vrot.lane.b32.xlu0 %v178, 127
        %v184 = vpop.permute.xlu0 %183
        %vm185 = vcmp.lt.s32.totalorder %v137, 127
        %v186 = vsel %vm185, %v182, %v184
        %v187 = vsel %vm185, %v184, %v182
        %188 = vst [vmem:[#allocation1] ss:$2 sm:$0xff] %v135
        %v189 = vld.sshfl [vmem:[#allocation1] sm:$0xff pattern:$0x75316420]
        %v190 = vld.sshfl [vmem:[#allocation1 + $0x8] sm:$0xff pattern:$0x75316420]
        %v193 = vsub.f32 %v175, %v189
        %v194 = vsub.f32 %v174, %v190
        %v197 = vrot.slane %v187, 4
        %vm198 = vcmask 1043456
        %v199 = vsel %vm198, %v186, %v197
        %v201 = vsub.f32 %v135, %v199
        %203 = vst [vmem:[#allocation1] ss:$2 sm:$0xff] %v201
        %v204 = vld.sshfl [vmem:[#allocation1] sm:$0xff pattern:$0x75316420]
        %v205 = vld.sshfl [vmem:[#allocation1 + $0x8] sm:$0xff pattern:$0x75316420]
        %v208 = vsub.f32 %v193, %v204
        %v209 = vsub.f32 %v194, %v205
        %vm210 = vcmp.ge.s32.totalorder %v161, 1
        %vm211 = vcmp.ge.s32.totalorder %v162, 1
        %vm212 = vcmp.le.s32.totalorder %v161, 14
        %vm213 = vcmp.le.s32.totalorder %v162, 14
        %vm214 = vmand %vm210, %vm212
        %vm215 = vmand %vm211, %vm213
        %216 = vst [vmem:[#allocation1] ss:$2 sm:$0xff] %v135
        %v217 = vld.sshfl [vmem:[#allocation1] sm:$0xff pattern:$0x75316420]
        %v218 = vld.sshfl [vmem:[#allocation1 + $0x8] sm:$0xff pattern:$0x75316420]
        %221 = vrot.lane.b32.xlu0 %v217, 16
        %v222 = vpop.permute.xlu0 %221
        %223 = vrot.lane.b32.xlu0 %v218, 16
        %v224 = vpop.permute.xlu0 %223
        %vm225 = vcmp.lt.s32.totalorder %v137, 16
        %v226 = vsel %vm225, %v222, %v224
        %v227 = vsel %vm225, %v224, %v222
        %228 = vst [vmem:[#allocation1] ss:$2 sm:$0xff] %v135
        %v229 = vld.sshfl [vmem:[#allocation1] sm:$0xff pattern:$0x75316420]
        %v230 = vld.sshfl [vmem:[#allocation1 + $0x8] sm:$0xff pattern:$0x75316420]
        %233 = vrot.lane.b32.xlu0 %v229, 112
        %v234 = vpop.permute.xlu0 %233
        %235 = vrot.lane.b32.xlu0 %v230, 112
        %v236 = vpop.permute.xlu0 %235
        %vm237 = vcmp.lt.s32.totalorder %v137, 112
        %v238 = vsel %vm237, %v234, %v236
        %v239 = vsel %vm237, %v236, %v234
        %240 = vst [vmem:[#allocation1] ss:$2 sm:$0xff] %v135
        %v241 = vld.sshfl [vmem:[#allocation1] sm:$0xff pattern:$0x75316420]
        %v242 = vld.sshfl [vmem:[#allocation1 + $0x8] sm:$0xff pattern:$0x75316420]
        %v245 = vsub.f32 %v227, %v241
        %v246 = vsub.f32 %v226, %v242
        %v249 = vrot.slane %v239, 4
        %v250 = vsel %vm198, %v238, %v249
        %v252 = vsub.f32 %v135, %v250
        %254 = vst [vmem:[#allocation1] ss:$2 sm:$0xff] %v252
        %v255 = vld.sshfl [vmem:[#allocation1] sm:$0xff pattern:$0x75316420]
        %v256 = vld.sshfl [vmem:[#allocation1 + $0x8] sm:$0xff pattern:$0x75316420]
        %v259 = vsub.f32 %v245, %v255
        %v260 = vsub.f32 %v246, %v256
        %vm261 = vcmp.ge.s32.totalorder %v137, 16
        %vm262 = vcmp.ge.s32.totalorder %v138, 16
        %vm263 = vcmp.lt.s32.totalorder %v137, 240
        %vm264 = vcmp.lt.s32.totalorder %v138, 240
        %vm265 = vmand %vm261, %vm263
        %vm266 = vmand %vm262, %vm264
        %v267 = vand.u32 2147483647, %v208
        %v268 = vand.u32 2147483647, %v209
        %v269 = vsel %vm214, %v267, 0.0
        %v270 = vsel %vm215, %v268, 0.0
        %v271 = vand.u32 2147483647, %v259
        %v272 = vand.u32 2147483647, %v260
        %v273 = vsel %vm265, %v271, 0.0
        %v274 = vsel %vm266, %v272, 0.0
        %v275 = vsel %vm198, %v269, 0.0
        %v276 = vsel %vm198, %v270, 0.0
        %v277 = vadd.f32 %v275, %v276
        %278 = vadd.xlane.f32.xlu0 %v277
        %v279 = vpop.xlane.xlu0 %278
        %v280 = vrot.slane %v279, 4
        %v281 = vadd.f32 %v279, %v280
        %v282 = vrot.slane %v281, 2
        %v283 = vadd.f32 %v281, %v282
        %v284 = vrot.slane %v283, 1
        %v285 = vadd.f32 %v283, %v284
        %s286 = vtos %v285
        %v287 = vsel %vm198, %v273, 0.0
        %v288 = vsel %vm198, %v274, 0.0
        %v289 = vadd.f32 %v287, %v288
        %290 = vadd.xlane.f32.xlu0 %v289
        %v291 = vpop.xlane.xlu0 %290
        %v292 = vrot.slane %v291, 4
        %v293 = vadd.f32 %v291, %v292
        %v294 = vrot.slane %v293, 2
        %v295 = vadd.f32 %v293, %v294
        %v296 = vrot.slane %v295, 1
        %v297 = vadd.f32 %v295, %v296
        %s298 = vtos %v297
        %s299 = sadd.f32 %s286, %s298
        %v300 = vstv %s299
        %301 = vst [vmem:[%s134] sm:$0xff] %v300
        %s302 = sand.u32 %s52, 1
        %s303 = scalar_lea.sflag [#allocation4], %s302
        %s304 = sand.u32 %s52, 1
        %s305 = smul.addr %s304, 8
        %s306 = scalar_lea.vmem [#allocation5], %s305
        // Predicated region
        $region29: #{tpu_custom_call.1} parent=23 // pred_check
          %p307 = pneg %p62
        $region30: #{tpu_custom_call.1} parent=23 // pred_check_branch
          %309 = sbr.rel (%p307) target = $region32
        $region31: #{tpu_custom_call.1} parent=23 // pred_region
          %311 = vsyncadd %s303, 0
          %s312 = smul.addr %s18, 8
          %s313 = scalar_lea.hbm %s1, %s312
          %s315 = sshll.u32 %s306, 4
          %s316 = int_to_ptr.vmem [resolvable:$true] %s315
          %s317 = sshll.u32 %s313, 4
          %s318 = int_to_ptr.hbm [resolvable:$true] %s317
          %320 = dma.vmem_to_hbm [thread:$0]  %s316, 128, %s318, %s303
        $region32: #{tpu_custom_call.1} parent=23 // pred_fallthru
          _
      $region24: #{tpu_custom_call.1} parent=5 // pred_fallthru
        _
      %p321 = scmp.le.s32.totalorder 2, %s13
      // Predicated region
      $region33: #{tpu_custom_call.1} parent=5 // pred_check
        %p322 = pneg %p321
      $region34: #{tpu_custom_call.1} parent=5 // pred_check_branch
        %324 = sbr.rel (%p322) target = $region36
      $region35: #{tpu_custom_call.1} parent=5 // pred_region
        %s325 = ssub.s32 %s13, 2
        // Predicated region
        $region37: #{tpu_custom_call.1} parent=35 // pred_check
          %p326 = pneg %p68
        $region38: #{tpu_custom_call.1} parent=35 // pred_check_branch
          %328 = sbr.rel (%p326) target = $region40
        $region39: #{tpu_custom_call.1} parent=35 // pred_region
          %s329 = sand.u32 %s53, 1
          %s330 = scalar_lea.sflag [#allocation4], %s329
          %s331 = sand.u32 %s53, 1
          %s332 = smul.addr %s331, 8
          %s333 = scalar_lea.vmem [#allocation5], %s332
          %335 = dma.done %s330, 128
        $region40: #{tpu_custom_call.1} parent=35 // pred_fallthru
          _
      $region36: #{tpu_custom_call.1} parent=5 // pred_fallthru
        _
    $region6: #{tpu_custom_call.1} parent=1 // loop_footer
      %s17 = sadd.s32 1, %s13
    $region7: #{tpu_custom_call.1} parent=1 // loop_footer_branch
      %12 = sbr.rel target = $region3
    $region8: #{tpu_custom_call.1} parent=1 // loop_exit
      _
    %336 = vsyncpa [#allocation3], 1
    %s337 = scalar_lea.sflag [#allocation3], 1
    %338 = vsyncpa %s337, 1
    %339 = vsyncpa [#allocation4], 1
    %s340 = scalar_lea.sflag [#allocation4], 1
    %341 = vsyncpa %s340, 1

</llo_original>
